<compile_context>
chip_gen: v6e
topology: v6e:2x2x1
jax: 0.10.0
libtpu: 0.0.40
codegen_flags: <defaults>
</compile_context>

<pallas_src>
import functools

import jax
import jax.numpy as jnp
from jax.experimental import pallas as pl
from jax.experimental.pallas import tpu as pltpu

_LANE = 128


def _ln_kernel(*refs, eps, inv_n, affine):
    if affine:
        x_ref, w_ref, b_ref, o_ref = refs
    else:
        x_ref, o_ref = refs
        w_ref = b_ref = None

    x = x_ref[...].astype(jnp.float32)

    def _rowsum(v):
        # Reduce non-lane feature axes first (VPU vreg adds), then one cross-lane
        # reduce per sample (XLU) — keeps the kernel memory-bound on v6e/v7x.
        for ax in range(1, v.ndim - 1):
            v = jnp.sum(v, axis=ax, keepdims=True)
        return jnp.sum(v, axis=-1, keepdims=True)

    mean = _rowsum(x) * inv_n
    xc = x - mean
    var = _rowsum(xc * xc) * inv_n          # two-pass variance: no cancellation
    inv = jax.lax.rsqrt(var + eps)
    y = xc * inv
    if affine:
        y = y * w_ref[...].astype(jnp.float32) + b_ref[...].astype(jnp.float32)
    o_ref[...] = y.astype(o_ref.dtype)


def _pick_tile_and_vmem(batch, f_pad_elems, itemsize, affine, ragged):
    """Choose batch tile TB and scoped-VMEM limit from the device's VMEM capacity."""
    try:
        phys = int(pltpu.get_tpu_info().vmem_capacity_bytes)
    except Exception:  # query unavailable -> assume the smallest generation (v7x)
        phys = 64 << 20
    if phys <= (64 << 20):          # v7x-class: 64 MiB physical -> leave headroom
        work_budget = 24 << 20
        scoped_cap = 48 << 20
    else:                           # v5e / v6e: 128 MiB physical
        work_budget = 64 << 20
        scoped_cap = 100 << 20

    # Per-sample working set: double-buffered input + output blocks (native dtype)
    # plus ~3 full-tile f32 temporaries (x upcast, centered x, squared) in the body.
    row_bytes = f_pad_elems * (4 * itemsize + 3 * 4)
    tb = max(1, min(batch, work_budget // max(row_bytes, 1)))
    # Keep >= ~8 grid steps so v7x megacore uses both TensorCores and DMAs pipeline.
    tb = max(1, min(tb, pl.cdiv(batch, 8)))
    if ragged:
        # (tb, F) block: second-minor dim must be a multiple of 8 or the full batch.
        tb = batch if batch <= 8 else max(8, (tb // 8) * 8)

    wb_bytes = (2 * f_pad_elems * 4) if affine else 0
    need = tb * row_bytes + wb_bytes + (4 << 20)   # + slack for compiler scratch
    vmem_limit = int(min(max(need, 32 << 20), scoped_cap))
    return tb, vmem_limit


def layer_norm_pallas(x, weight=None, bias=None, eps=1e-5):
    """x: [B, *feature_dims]; weight/bias: feature-shaped arrays or None (non-affine)."""
    B = int(x.shape[0])
    F = 1
    for d in x.shape[1:]:
        F *= int(d)
    G = pl.cdiv(F, _LANE)
    ragged = (F % _LANE) != 0

    affine = (weight is not None) or (bias is not None)
    if affine:
        assert weight is not None and bias is not None, (
            "weight and bias must both be provided (or both be None)")

    itemsize = jnp.dtype(x.dtype).itemsize
    tb, vmem_limit = _pick_tile_and_vmem(B, G * _LANE, itemsize, affine, ragged)
    grid = (pl.cdiv(B, tb),)
    # TODO(synk): for very large F where even tb=1 exceeds the VMEM budget, add a
    # G-split grid axis with two-phase stats (accumulate s/ss, then re-stream x).

    if ragged:
        # [B, F] view; last block dim equals the full array dim, so Mosaic masks the
        # ragged lane tail internally — no host-side pad/slice HBM round-trips.
        x_in = x.reshape(B, F)
        x_spec = pl.BlockSpec((tb, F), lambda i: (i, 0))
        wb_shape = (1, F)
        wb_spec = pl.BlockSpec((1, F), lambda i: (0, 0))
    else:
        # Lane-dense [B, G, 128] view: every vreg fully occupied even for tiny batch.
        x_in = x.reshape(B, G, _LANE)
        x_spec = pl.BlockSpec((tb, G, _LANE), lambda i: (i, 0, 0))
        wb_shape = (1, G, _LANE)
        wb_spec = pl.BlockSpec((1, G, _LANE), lambda i: (0, 0, 0))

    kernel = functools.partial(
        _ln_kernel, eps=float(eps), inv_n=float(1.0 / F), affine=affine)
    cparams = pltpu.CompilerParams(
        dimension_semantics=("parallel",),   # rows independent -> both TCs on v7x
        vmem_limit_bytes=vmem_limit,
    )
    out_shape = jax.ShapeDtypeStruct(x_in.shape, x.dtype)

    if affine:
        operands = (x_in, weight.reshape(wb_shape), bias.reshape(wb_shape))
        in_specs = [x_spec, wb_spec, wb_spec]
    else:
        operands = (x_in,)
        in_specs = [x_spec]

    out = pl.pallas_call(
        kernel,
        out_shape=out_shape,
        grid=grid,
        in_specs=in_specs,
        out_specs=x_spec,
        compiler_params=cparams,
    )(*operands)

    return out.reshape(x.shape)


class LayerNormPallas:
    """Mirror of the PyTorch module; affine params initialized to ones/zeros."""

    def __init__(self, normalized_shape, eps=1e-5, elementwise_affine=True):
        if isinstance(normalized_shape, (tuple, list)):
            self.normalized_shape = tuple(int(d) for d in normalized_shape)
        else:
            self.normalized_shape = (int(normalized_shape),)
        self.eps = eps
        self.elementwise_affine = elementwise_affine
        if elementwise_affine:
            self.weight = jnp.ones(self.normalized_shape, dtype=jnp.float32)
            self.bias = jnp.zeros(self.normalized_shape, dtype=jnp.float32)
        else:
            self.weight, self.bias = None, None

    def __call__(self, x, idx=None):
        # TODO(synk): idx-based channel selection (weight[:, idx, :]) not implemented;
        # forward uses the default idx=None path (matches F.layer_norm semantics).
        if self.elementwise_affine:
            return layer_norm_pallas(x, self.weight, self.bias, self.eps)
        return layer_norm_pallas(x, None, None, self.eps)


def _reference(x, weight, bias, eps):
    xf = x.astype(jnp.float32)
    axes = tuple(range(1, x.ndim))
    mean = jnp.mean(xf, axis=axes, keepdims=True)
    var = jnp.mean((xf - mean) ** 2, axis=axes, keepdims=True)
    y = (xf - mean) / jnp.sqrt(var + eps)
    if weight is not None:
        y = y * weight[None] + bias[None]
    return y.astype(x.dtype)


if __name__ == "__main__":
    key = jax.random.PRNGKey(0)
    k1, k2 = jax.random.split(key)

    # Shape implied by the module's forward: [batch, channel, node, length].
    B, C, N, L = 2, 4, 16, 16
    x = jax.random.normal(k1, (B, C, N, L), dtype=jnp.float32)

    # Affine path (F = 1024, lane-aligned [B, G, 128] layout).
    ln = LayerNormPallas((C, N, L), eps=1e-5, elementwise_affine=True)
    y = jax.block_until_ready(ln(x))
    y_ref = _reference(x, ln.weight, ln.bias, ln.eps)
    assert y.shape == (B, C, N, L)
    assert jnp.allclose(y, y_ref, atol=1e-4, rtol=1e-4)

    # Non-affine path (kernel variant with no weight/bias HBM traffic).
    ln2 = LayerNormPallas((C, N, L), eps=1e-5, elementwise_affine=False)
    y2 = jax.block_until_ready(ln2(x))
    y2_ref = _reference(x, None, None, ln2.eps)
    assert jnp.allclose(y2, y2_ref, atol=1e-4, rtol=1e-4)

    # Ragged feature size (F = 105, not a multiple of 128): exercises the no-pad
    # [B, F] path where Mosaic masks the lane tail inside the kernel.
    Cr, Nr, Lr = 3, 5, 7
    xr = jax.random.normal(k2, (B, Cr, Nr, Lr), dtype=jnp.float32)
    ln3 = LayerNormPallas((Cr, Nr, Lr), eps=1e-5, elementwise_affine=True)
    y3 = jax.block_until_ready(ln3(xr))
    y3_ref = _reference(xr, ln3.weight, ln3.bias, ln3.eps)
    assert y3.shape == xr.shape
    assert jnp.allclose(y3, y3_ref, atol=1e-4, rtol=1e-4)

    print("KERNEL_OK")
</pallas_src>

<mosaic_0001>
module attributes {stable_mosaic.version = 11 : i64} {
  func.func @_ln_kernel(%arg0: i32, %arg1: memref<1x8x128xf32, #tpu.memory_space<vmem>>, %arg2: memref<1x8x128xf32, #tpu.memory_space<vmem>>, %arg3: memref<1x8x128xf32, #tpu.memory_space<vmem>>, %arg4: memref<1x8x128xf32, #tpu.memory_space<vmem>>) attributes {dimension_semantics = [#tpu.dimension_semantics<parallel>], iteration_bounds = array<i64: 2>, scalar_prefetch = 0 : i64, scratch_operands = 0 : i64, tpu.core_type = #tpu.core_type<tc>, window_params = [{transform_indices = @transform_0, window_bounds = array<i64: 1, 8, 128>}, {pipeline_mode = #tpu.pipeline_mode<synchronous>, transform_indices = @transform_1, window_bounds = array<i64: 1, 8, 128>}, {pipeline_mode = #tpu.pipeline_mode<synchronous>, transform_indices = @transform_2, window_bounds = array<i64: 1, 8, 128>}, {transform_indices = @transform_3, window_bounds = array<i64: 1, 8, 128>}]} {
    %c0 = arith.constant 0 : index
    %c0_0 = arith.constant 0 : index
    %c0_1 = arith.constant 0 : index
    %0 = vector.load %arg1[%c0, %c0_0, %c0_1] : memref<1x8x128xf32, #tpu.memory_space<vmem>>, vector<1x8x128xf32>
    %cst = arith.constant dense<0.000000e+00> : vector<1x128xf32>
    %1 = vector.multi_reduction <add>, %0, %cst [1] : vector<1x8x128xf32> to vector<1x128xf32>
    %2 = vector.shape_cast %1 : vector<1x128xf32> to vector<1x1x128xf32>
    %cst_2 = arith.constant dense<0.000000e+00> : vector<1x1xf32>
    %3 = vector.multi_reduction <add>, %2, %cst_2 [2] : vector<1x1x128xf32> to vector<1x1xf32>
    %4 = vector.shape_cast %3 : vector<1x1xf32> to vector<1x1x1xf32>
    %cst_3 = arith.constant 9.765625E-4 : f32
    %5 = vector.broadcast %cst_3 : f32 to vector<1x1x1xf32>
    %6 = arith.mulf %4, %5 : vector<1x1x1xf32>
    %7 = vector.broadcast %6 : vector<1x1x1xf32> to vector<1x8x128xf32>
    %8 = arith.subf %0, %7 : vector<1x8x128xf32>
    %9 = arith.mulf %8, %8 : vector<1x8x128xf32>
    %cst_4 = arith.constant dense<0.000000e+00> : vector<1x128xf32>
    %10 = vector.multi_reduction <add>, %9, %cst_4 [1] : vector<1x8x128xf32> to vector<1x128xf32>
    %11 = vector.shape_cast %10 : vector<1x128xf32> to vector<1x1x128xf32>
    %cst_5 = arith.constant dense<0.000000e+00> : vector<1x1xf32>
    %12 = vector.multi_reduction <add>, %11, %cst_5 [2] : vector<1x1x128xf32> to vector<1x1xf32>
    %13 = vector.shape_cast %12 : vector<1x1xf32> to vector<1x1x1xf32>
    %cst_6 = arith.constant 9.765625E-4 : f32
    %14 = vector.broadcast %cst_6 : f32 to vector<1x1x1xf32>
    %15 = arith.mulf %13, %14 : vector<1x1x1xf32>
    %cst_7 = arith.constant 9.99999974E-6 : f32
    %16 = vector.broadcast %cst_7 : f32 to vector<1x1x1xf32>
    %17 = arith.addf %15, %16 : vector<1x1x1xf32>
    %18 = math.rsqrt %17 : vector<1x1x1xf32>
    %19 = vector.broadcast %18 : vector<1x1x1xf32> to vector<1x8x128xf32>
    %20 = arith.mulf %8, %19 : vector<1x8x128xf32>
    %c0_8 = arith.constant 0 : index
    %c0_9 = arith.constant 0 : index
    %c0_10 = arith.constant 0 : index
    %21 = vector.load %arg2[%c0_8, %c0_9, %c0_10] : memref<1x8x128xf32, #tpu.memory_space<vmem>>, vector<1x8x128xf32>
    %22 = arith.mulf %20, %21 : vector<1x8x128xf32>
    %c0_11 = arith.constant 0 : index
    %c0_12 = arith.constant 0 : index
    %c0_13 = arith.constant 0 : index
    %23 = vector.load %arg3[%c0_11, %c0_12, %c0_13] : memref<1x8x128xf32, #tpu.memory_space<vmem>>, vector<1x8x128xf32>
    %24 = arith.addf %22, %23 : vector<1x8x128xf32>
    %c0_14 = arith.constant 0 : index
    %c0_15 = arith.constant 0 : index
    %c0_16 = arith.constant 0 : index
    %25 = vector.load %arg4[%c0_14, %c0_15, %c0_16] : memref<1x8x128xf32, #tpu.memory_space<vmem>>, vector<1x8x128xf32>
    tpu.vector_store %arg4[%c0_14, %c0_15, %c0_16], %24 {strides = array<i32>} : memref<1x8x128xf32, #tpu.memory_space<vmem>>, vector<1x8x128xf32>,
    return
  }
  func.func @transform_0(%arg0: i32) -> (i32, i32, i32) {
    %c0_i32 = arith.constant 0 : i32
    %c0_i32_0 = arith.constant 0 : i32
    %c0_i32_1 = arith.constant 0 : i32
    return %arg0, %c0_i32, %c0_i32_0 : i32, i32, i32
  }
  func.func @transform_1(%arg0: i32) -> (i32, i32, i32) {
    %c0_i32 = arith.constant 0 : i32
    %c0_i32_0 = arith.constant 0 : i32
    %c0_i32_1 = arith.constant 0 : i32
    %c0_i32_2 = arith.constant 0 : i32
    return %c0_i32, %c0_i32_0, %c0_i32_1 : i32, i32, i32
  }
  func.func @transform_2(%arg0: i32) -> (i32, i32, i32) {
    %c0_i32 = arith.constant 0 : i32
    %c0_i32_0 = arith.constant 0 : i32
    %c0_i32_1 = arith.constant 0 : i32
    %c0_i32_2 = arith.constant 0 : i32
    return %c0_i32, %c0_i32_0, %c0_i32_1 : i32, i32, i32
  }
  func.func @transform_3(%arg0: i32) -> (i32, i32, i32) {
    %c0_i32 = arith.constant 0 : i32
    %c0_i32_0 = arith.constant 0 : i32
    %c0_i32_1 = arith.constant 0 : i32
    return %arg0, %c0_i32, %c0_i32_0 : i32, i32, i32
  }
}

</mosaic_0001>

<llo_original>
// kernel: tpu_custom_call.1
$region0: #{tpu_custom_call.1}
  #allocation0 [shape = 'u32[]', space=smem, size = 0x4, offset = 0x4, fixed_abs, tag = 'smem constant byte address 0x4 - core index']
  #allocation1 [shape = 'u32[144,128]{1,0:T(1,128)}', space=vmem, size = 0x12000, scoped, tag = 'internal scratch']
  %s0 = inlined_call_operand.hbm [shape: f32[2,8,128], index: 0, kind: input, shape index: {}]
  %s1 = inlined_call_operand.hbm [shape: f32[1,8,128], index: 1, kind: input, shape index: {}]
  %s2 = inlined_call_operand.hbm [shape: f32[1,8,128], index: 2, kind: input, shape index: {}]
  %s3 = inlined_call_operand.hbm [shape: f32[2,8,128], index: 3, kind: output, shape index: {}]
  %s4 = sld [smem:[#allocation0]]
  $region57: #{tpu_custom_call.1} parent=0
    _
  %s6 = ssub.s32 1, %s4
  %s7 = scalar_select 0, %s6, %s4
  $region1: #{tpu_custom_call.1} parent=0
    #allocation2 [shape = 'u8[8192]{0}', space=vmem, size = 0x2000, scoped, tag = 'input window, operand 0']
    #allocation3 [shape = 's32[2]{0}', space=sflag, size = 0x8, scoped, tag = 'scoped memory for tpu_custom_call.1']
    #allocation4 [shape = 's32[2]{0}', space=sflag, size = 0x8, scoped, tag = 'scoped memory for tpu_custom_call.1']
    #allocation5 [shape = 'u8[4096]{0}', space=vmem, size = 0x1000, scoped, tag = 'input window, operand 1, single buffered']
    #allocation6 [shape = 's32[1]{0}', space=sflag, size = 0x4, scoped, tag = 'scoped memory for tpu_custom_call.1']
    #allocation7 [shape = 'u8[4096]{0}', space=vmem, size = 0x1000, scoped, tag = 'input window, operand 2, single buffered']
    #allocation8 [shape = 'u8[8192]{0}', space=vmem, size = 0x2000, scoped, tag = 'output window, operand 0']
    %8 = vsyncpa [#allocation3], 0
    %s9 = scalar_lea.sflag [#allocation3], 1
    %10 = vsyncpa %s9, 0
    %11 = vsyncpa [#allocation6], 0
    %12 = vsyncpa [#allocation4], 0
    %s13 = scalar_lea.sflag [#allocation4], 1
    %14 = vsyncpa %s13, 0
    loop: start=0, step=1, limit=4
    $region2: #{tpu_custom_call.1} parent=1 // loop_pre_header
      _
    $region3: #{tpu_custom_call.1} parent=1 // loop_header
      %s16 = sphi 0, %s20
      %p17 = scmp.ge.s32.totalorder %s16, 4
      %s26 = sphi 0, %s28
      %s29 = sphi 0, %s26
      %s30 = sphi 0, %s29
      %s46 = sphi 0, %s30
      %s50 = sphi 0, %s50
      %s52 = sphi 0, %s50
      %s53 = sphi 0, %s52
      %s67 = sphi 0, %s53
      %s71 = sphi 0, %s71
      %s73 = sphi 0, %s71
      %s74 = sphi 0, %s73
      %s88 = sphi 0, %s74
      %s94 = sphi 0, %s96
      %s97 = sphi 0, %s94
      %s98 = sphi 0, %s97
      %s114 = sphi 0, %s98
    $region4: #{tpu_custom_call.1} parent=1 // loop_header_branch
      %19 = sbr.rel (%p17) target = $region8
    $region5: #{tpu_custom_call.1} parent=1 // loop_body
      %s21 = ssub.s32 %s16, 1
      %s22 = ssub.s32 %s16, 2
      %s23 = sadd.s32 %s16, 1
      %s24 = ssub.s32 %s16, %s23
      %p25 = scmp.eq.s32.totalorder %s24, 0
      %s27 = sadd.s32 %s26, 1
      %s28 = scalar_select %p25, %s26, %s27
      %p31 = pneg %p25
      %p32 = scmp.eq.s32.totalorder %s16, 1
      %p33 = por %p31, %p32
      %p34 = scmp.ne.s32.totalorder %s26, %s29
      %p35 = scmp.eq.s32.totalorder %s16, 0
      %p36 = por %p34, %p35
      %p37 = scmp.ne.s32.totalorder %s26, %s29
      %p38 = scmp.eq.s32.totalorder %s21, 1
      %p39 = por %p37, %p38
      %p40 = scmp.ne.s32.totalorder %s29, %s30
      %p41 = scmp.eq.s32.totalorder %s21, 0
      %p42 = por %p40, %p41
      %p43 = scmp.ne.s32.totalorder %s29, %s30
      %p44 = scmp.eq.s32.totalorder %s22, 1
      %p45 = por %p43, %p44
      %p47 = scmp.ne.s32.totalorder %s30, %s46
      %p48 = scmp.eq.s32.totalorder %s22, 0
      %p49 = por %p47, %p48
      %s51 = sadd.s32 %s50, 1
      %p54 = scmp.eq.s32.totalorder %s16, 1
      %p55 = scmp.ne.s32.totalorder %s50, %s52
      %p56 = scmp.eq.s32.totalorder %s16, 0
      %p57 = por %p55, %p56
      %p58 = scmp.ne.s32.totalorder %s50, %s52
      %p59 = scmp.eq.s32.totalorder %s21, 1
      %p60 = por %p58, %p59
      %p61 = scmp.ne.s32.totalorder %s52, %s53
      %p62 = scmp.eq.s32.totalorder %s21, 0
      %p63 = por %p61, %p62
      %p64 = scmp.ne.s32.totalorder %s52, %s53
      %p65 = scmp.eq.s32.totalorder %s22, 1
      %p66 = por %p64, %p65
      %p68 = scmp.ne.s32.totalorder %s53, %s67
      %p69 = scmp.eq.s32.totalorder %s22, 0
      %p70 = por %p68, %p69
      %s72 = sadd.s32 %s71, 1
      %p75 = scmp.eq.s32.totalorder %s16, 1
      %p76 = scmp.ne.s32.totalorder %s71, %s73
      %p77 = scmp.eq.s32.totalorder %s16, 0
      %p78 = por %p76, %p77
      %p79 = scmp.ne.s32.totalorder %s71, %s73
      %p80 = scmp.eq.s32.totalorder %s21, 1
      %p81 = por %p79, %p80
      %p82 = scmp.ne.s32.totalorder %s73, %s74
      %p83 = scmp.eq.s32.totalorder %s21, 0
      %p84 = por %p82, %p83
      %p85 = scmp.ne.s32.totalorder %s73, %s74
      %p86 = scmp.eq.s32.totalorder %s22, 1
      %p87 = por %p85, %p86
      %p89 = scmp.ne.s32.totalorder %s74, %s88
      %p90 = scmp.eq.s32.totalorder %s22, 0
      %p91 = por %p89, %p90
      %s92 = ssub.s32 %s16, %s23
      %p93 = scmp.eq.s32.totalorder %s92, 0
      %s95 = sadd.s32 %s94, 1
      %s96 = scalar_select %p93, %s94, %s95
      %p99 = pneg %p93
      %p100 = scmp.eq.s32.totalorder %s16, 1
      %p101 = por %p99, %p100
      %p102 = scmp.ne.s32.totalorder %s94, %s97
      %p103 = scmp.eq.s32.totalorder %s16, 0
      %p104 = por %p102, %p103
      %p105 = scmp.ne.s32.totalorder %s94, %s97
      %p106 = scmp.eq.s32.totalorder %s21, 1
      %p107 = por %p105, %p106
      %p108 = scmp.ne.s32.totalorder %s97, %s98
      %p109 = scmp.eq.s32.totalorder %s21, 0
      %p110 = por %p108, %p109
      %p111 = scmp.ne.s32.totalorder %s97, %s98
      %p112 = scmp.eq.s32.totalorder %s22, 1
      %p113 = por %p111, %p112
      %p115 = scmp.ne.s32.totalorder %s98, %s114
      %p116 = scmp.eq.s32.totalorder %s22, 0
      %p117 = por %p115, %p116
      %p118 = scmp.le.s32.totalorder 1, %s16
      %p119 = scmp.lt.s32.totalorder %s16, 3
      %p120 = pnand %p118, %p119
      %p121 = pneg %p120
      // Predicated region
      $region9: #{tpu_custom_call.1} parent=5 // pred_check
        _
      $region10: #{tpu_custom_call.1} parent=5 // pred_check_branch
        %123 = sbr.rel (%p120) target = $region12
      $region11: #{tpu_custom_call.1} parent=5 // pred_region
        %s124 = ssub.s32 %s16, 1
        // Predicated region
        $region13: #{tpu_custom_call.1} parent=11 // pred_check
          %p125 = pneg %p63
        $region14: #{tpu_custom_call.1} parent=11 // pred_check_branch
          %127 = sbr.rel (%p125) target = $region16
        $region15: #{tpu_custom_call.1} parent=11 // pred_region
          %s129 = ssub.s32 128, 128
          %130 = vsyncadd [#allocation6], %s129
          %s132 = sshll.u32 [#allocation5], 4
          %s133 = int_to_ptr.vmem [resolvable:$true] %s132
          %135 = dma.hbm_to_vmem [thread:$0]  %s1, 128, %s133, [#allocation6]
        $region16: #{tpu_custom_call.1} parent=11 // pred_fallthru
          _
        // Predicated region
        $region17: #{tpu_custom_call.1} parent=11 // pred_check
          %p136 = pneg %p84
        $region18: #{tpu_custom_call.1} parent=11 // pred_check_branch
          %138 = sbr.rel (%p136) target = $region20
        $region19: #{tpu_custom_call.1} parent=11 // pred_region
          %s140 = ssub.s32 128, 128
          %141 = vsyncadd [#allocation6], %s140
          %s143 = sshll.u32 [#allocation7], 4
          %s144 = int_to_ptr.vmem [resolvable:$true] %s143
          %146 = dma.hbm_to_vmem [thread:$0]  %s2, 128, %s144, [#allocation6]
        $region20: #{tpu_custom_call.1} parent=11 // pred_fallthru
          _
      $region12: #{tpu_custom_call.1} parent=5 // pred_fallthru
        _
      %p147 = scmp.lt.s32.totalorder %s16, 2
      // Predicated region
      $region21: #{tpu_custom_call.1} parent=5 // pred_check
        %p148 = pneg %p147
      $region22: #{tpu_custom_call.1} parent=5 // pred_check_branch
        %150 = sbr.rel (%p148) target = $region24
      $region23: #{tpu_custom_call.1} parent=5 // pred_region
        // Predicated region
        $region25: #{tpu_custom_call.1} parent=23 // pred_check
          %p151 = pneg %p36
        $region26: #{tpu_custom_call.1} parent=23 // pred_check_branch
          %153 = sbr.rel (%p151) target = $region28
        $region27: #{tpu_custom_call.1} parent=23 // pred_region
          %s154 = sand.u32 %s26, 1
          %s155 = scalar_lea.sflag [#allocation3], %s154
          %s156 = sand.u32 %s26, 1
          %s157 = smul.addr %s156, 8
          %s158 = scalar_lea.vmem [#allocation2], %s157
          %s160 = ssub.s32 128, 128
          %161 = vsyncadd %s155, %s160
          %s162 = smul.addr %s16, 128
          %s163 = scalar_lea.hbm %s0, %s162
          %s165 = sshll.u32 %s158, 4
          %s166 = int_to_ptr.vmem [resolvable:$true] %s165
          %168 = dma.hbm_to_vmem [thread:$0]  %s163, 128, %s166, %s155
        $region28: #{tpu_custom_call.1} parent=23 // pred_fallthru
          _
      $region24: #{tpu_custom_call.1} parent=5 // pred_fallthru
        _
      %p169 = scmp.le.s32.totalorder 1, %s16
      %p170 = scmp.lt.s32.totalorder %s16, 3
      %p171 = pnand %p169, %p170
      %p172 = pneg %p171
      // Predicated region
      $region29: #{tpu_custom_call.1} parent=5 // pred_check
        _
      $region30: #{tpu_custom_call.1} parent=5 // pred_check_branch
        %174 = sbr.rel (%p171) target = $region32
      $region31: #{tpu_custom_call.1} parent=5 // pred_region
        %s175 = ssub.s32 %s16, 1
        %s176 = sand.u32 %s29, 1
        %s177 = scalar_lea.sflag [#allocation3], %s176
        %s178 = sand.u32 %s29, 1
        %s179 = smul.addr %s178, 8
        %s180 = scalar_lea.vmem [#allocation2], %s179
        // Predicated region
        $region33: #{tpu_custom_call.1} parent=31 // pred_check
          %p181 = pneg %p42
        $region34: #{tpu_custom_call.1} parent=31 // pred_check_branch
          %183 = sbr.rel (%p181) target = $region36
        $region35: #{tpu_custom_call.1} parent=31 // pred_region
          %184 = dma.done %s177, 128
        $region36: #{tpu_custom_call.1} parent=31 // pred_fallthru
          _
        // Predicated region
        $region37: #{tpu_custom_call.1} parent=31 // pred_check
          %p185 = pneg %p63
        $region38: #{tpu_custom_call.1} parent=31 // pred_check_branch
          %187 = sbr.rel (%p185) target = $region40
        $region39: #{tpu_custom_call.1} parent=31 // pred_region
          %188 = dma.done [#allocation6], 128
        $region40: #{tpu_custom_call.1} parent=31 // pred_fallthru
          _
        // Predicated region
        $region41: #{tpu_custom_call.1} parent=31 // pred_check
          %p189 = pneg %p84
        $region42: #{tpu_custom_call.1} parent=31 // pred_check_branch
          %191 = sbr.rel (%p189) target = $region44
        $region43: #{tpu_custom_call.1} parent=31 // pred_region
          %192 = dma.done [#allocation6], 128
        $region44: #{tpu_custom_call.1} parent=31 // pred_fallthru
          _
        %s193 = sand.u32 %s29, 1
        %s194 = scalar_lea.sflag [#allocation3], %s193
        %s195 = sand.u32 %s29, 1
        %s196 = smul.addr %s195, 8
        %s197 = scalar_lea.vmem [#allocation2], %s196
        %p198 = pneg %p42
        %p199 = pneg %p39
        %p200 = pneg %p63
        %p201 = pneg %p60
        %p202 = pneg %p84
        %p203 = pneg %p81
        %p204 = pneg %p110
        %p205 = pneg %p107
        %s206 = sand.u32 %s97, 1
        %s207 = scalar_lea.sflag [#allocation4], %s206
        %s208 = sand.u32 %s97, 1
        %s209 = smul.addr %s208, 8
        %s210 = scalar_lea.vmem [#allocation8], %s209
        %v211 = vld [vmem:[%s180] sm:$0xff]
        %v212 = vrot.slane %v211, 4
        %v213 = vadd.f32 %v211, %v212
        %v214 = vrot.slane %v213, 2
        %v215 = vadd.f32 %v213, %v214
        %v216 = vrot.slane %v215, 1
        %v217 = vadd.f32 %v215, %v216
        %218 = vadd.xlane.f32.xlu0 %v217
        %v219 = vpop.xlane.xlu0 %218
        %v220 = vmul.f32 %v219, 0.0009765625
        %v221 = vsub.f32 %v211, %v220
        %v222 = vmul.f32 %v221, %v221
        %v223 = vrot.slane %v222, 4
        %v224 = vadd.f32 %v222, %v223
        %v225 = vrot.slane %v224, 2
        %v226 = vadd.f32 %v224, %v225
        %v227 = vrot.slane %v226, 1
        %v228 = vadd.f32 %v226, %v227
        %229 = vadd.xlane.f32.xlu0 %v228
        %v230 = vpop.xlane.xlu0 %229
        %v231 = vmul.f32 %v230, 0.0009765625
        %v232 = vadd.f32 %v231, 1e-05
        %v233 = vrsqrt.pop %v232
        %v234 = vmul.f32 %v221, %v233
        %v235 = vld [vmem:[#allocation5] sm:$0xff]
        %v236 = vmul.f32 %v234, %v235
        %v237 = vld [vmem:[#allocation7] sm:$0xff]
        %v238 = vadd.f32 %v236, %v237
        %239 = vst [vmem:[%s210] sm:$0xff] %v238
        %s240 = sand.u32 %s97, 1
        %s241 = scalar_lea.sflag [#allocation4], %s240
        %s242 = sand.u32 %s97, 1
        %s243 = smul.addr %s242, 8
        %s244 = scalar_lea.vmem [#allocation8], %s243
        // Predicated region
        $region45: #{tpu_custom_call.1} parent=31 // pred_check
          %p245 = pneg %p107
        $region46: #{tpu_custom_call.1} parent=31 // pred_check_branch
          %247 = sbr.rel (%p245) target = $region48
        $region47: #{tpu_custom_call.1} parent=31 // pred_region
          %s249 = ssub.s32 128, 128
          %250 = vsyncadd %s241, %s249
          %s251 = smul.addr %s21, 128
          %s252 = scalar_lea.hbm %s3, %s251
          %s254 = sshll.u32 %s244, 4
          %s255 = int_to_ptr.vmem [resolvable:$true] %s254
          %257 = dma.vmem_to_hbm [thread:$0]  %s255, 128, %s252, %s241
        $region48: #{tpu_custom_call.1} parent=31 // pred_fallthru
          _
      $region32: #{tpu_custom_call.1} parent=5 // pred_fallthru
        _
      %p258 = scmp.le.s32.totalorder 2, %s16
      // Predicated region
      $region49: #{tpu_custom_call.1} parent=5 // pred_check
        %p259 = pneg %p258
      $region50: #{tpu_custom_call.1} parent=5 // pred_check_branch
        %261 = sbr.rel (%p259) target = $region52
      $region51: #{tpu_custom_call.1} parent=5 // pred_region
        %s262 = ssub.s32 %s16, 2
        // Predicated region
        $region53: #{tpu_custom_call.1} parent=51 // pred_check
          %p263 = pneg %p113
        $region54: #{tpu_custom_call.1} parent=51 // pred_check_branch
          %265 = sbr.rel (%p263) target = $region56
        $region55: #{tpu_custom_call.1} parent=51 // pred_region
          %s266 = sand.u32 %s98, 1
          %s267 = scalar_lea.sflag [#allocation4], %s266
          %s268 = sand.u32 %s98, 1
          %s269 = smul.addr %s268, 8
          %s270 = scalar_lea.vmem [#allocation8], %s269
          %271 = dma.done %s267, 128
        $region56: #{tpu_custom_call.1} parent=51 // pred_fallthru
          _
      $region52: #{tpu_custom_call.1} parent=5 // pred_fallthru
        _
    $region6: #{tpu_custom_call.1} parent=1 // loop_footer
      %s20 = sadd.s32 1, %s16
    $region7: #{tpu_custom_call.1} parent=1 // loop_footer_branch
      %15 = sbr.rel target = $region3
    $region8: #{tpu_custom_call.1} parent=1 // loop_exit
      _
    %272 = vsyncpa [#allocation3], 1
    %s273 = scalar_lea.sflag [#allocation3], 1
    %274 = vsyncpa %s273, 1
    %275 = vsyncpa [#allocation6], 1
    %276 = vsyncpa [#allocation4], 1
    %s277 = scalar_lea.sflag [#allocation4], 1
    %278 = vsyncpa %s277, 1

</llo_original>
